<compile_context>
chip_gen: v5e
topology: v5e:2x2
jax: 0.10.0
libtpu: 0.0.40
codegen_flags: <defaults>
</compile_context>

<pallas_src>
import functools

import jax
import jax.numpy as jnp
from jax.experimental import pallas as pl
from jax.experimental.pallas import tpu as pltpu


_BIG_DIST2 = 1e30  # ||c||^2 sentinel for padded clusters -> soft assignment == 0


def _round_up(v, m):
    return ((v + m - 1) // m) * m


def _vlad_kernel(x_ref, ct_ref, ckd_ref, cc_ref, o_ref, ssum_ref, *,
                 alpha, n_total, agg_dtype):
    """One grid step: (tb, tn, D) descriptors vs. the (padded) centroid table."""
    tb, tn, D = x_ref.shape
    Kp = ct_ref.shape[1]
    n_idx = pl.program_id(1)

    @pl.when(n_idx == 0)
    def _init():
        o_ref[...] = jnp.zeros_like(o_ref)
        ssum_ref[...] = jnp.zeros_like(ssum_ref)

    ct = ct_ref[...]            # (D, Kp) f32, transposed once outside the kernel
    cc = cc_ref[...]            # (1, Kp)  ||c_k||^2  (BIG for padded clusters)

    if tb == 1:
        x2 = x_ref[0].astype(jnp.float32)                        # (tn, D)
    else:
        # tb > 1 only when tn == N and N % 8 == 0, so this leading-dim merge
        # is a pure sublane re-labelling (no relayout).
        x2 = x_ref[...].astype(jnp.float32).reshape(tb * tn, D)

    ragged = (n_total % tn) != 0                                  # static
    if ragged:
        # Only the last N-chunk is partial (tb == 1 here); mask garbage rows.
        row = jax.lax.broadcasted_iota(jnp.int32, (tn, 1), 0)
        valid = (n_idx * tn + row) < n_total
        x2 = jnp.where(valid, x2, 0.0)

    # ---- pairwise Euclidean distances: ||x||^2 + ||c||^2 - 2 x.c -----------
    xx = jnp.sum(x2 * x2, axis=1, keepdims=True)                  # (M, 1)
    xc = jnp.dot(x2, ct,                                          # (M, Kp) MXU
                 precision=jax.lax.Precision.HIGHEST,
                 preferred_element_type=jnp.float32)
    dist = jnp.sqrt(jnp.maximum(xx + cc - 2.0 * xc, 0.0))

    # ---- softmax over clusters of (-alpha * dist) ---------------------------
    logits = (-alpha) * dist
    m = jnp.max(logits, axis=1, keepdims=True)
    e = jnp.exp(logits - m)
    denom = jnp.sum(e, axis=1, keepdims=True)
    soft = e * pl.reciprocal(denom, approx=True)                  # (M, Kp)
    if ragged:
        soft = jnp.where(valid, soft, 0.0)

    # ---- accumulate soft^T x and per-cluster soft sums ----------------------
    # The "- (sum_n soft[n,k]) * c[k]" correction is applied once at finalize.
    sa = soft.astype(agg_dtype)
    xa = x2.astype(agg_dtype)
    for b in range(tb):                                           # tb <= 4 unroll
        rows = slice(b * tn, (b + 1) * tn)
        agg = jax.lax.dot_general(                                # (Kp, D) MXU
            sa[rows], xa[rows],
            (((0,), (0,)), ((), ())),
            preferred_element_type=jnp.float32)
        o_ref[b] = o_ref[b] + agg
        ssum_ref[b] = ssum_ref[b] + jnp.sum(soft[rows], axis=0, keepdims=True)

    # ---- finalize: residual correction + global L2 normalization ------------
    @pl.when(n_idx == pl.num_programs(1) - 1)
    def _finalize():
        c_kd = ckd_ref[...]                                       # (Kp, D)
        for b in range(tb):
            ssum_col = ssum_ref[b].T                              # (Kp, 1), once
            v = o_ref[b] - ssum_col * c_kd                        # padded rows stay 0
            inv = jax.lax.rsqrt(jnp.maximum(jnp.sum(v * v), 1e-24))
            o_ref[b] = (v * inv).astype(o_ref.dtype)


def _pick_block_n(N, D, itemsize, budget_bytes):
    """Rows of x per grid step: the whole N axis if it fits the per-buffer
    budget, else the largest multiple-of-8 chunk (ragged tail masked)."""
    if N <= 8 or N * D * itemsize <= budget_bytes:
        return N
    cap = (budget_bytes // max(1, D * itemsize)) // 8 * 8
    return int(max(8, min(cap, (N // 8) * 8)))


def _pick_block_b(B, N, D, tn, itemsize, budget_bytes):
    """Fold batch rows per step only when one step covers all of N; keep >= 2
    steps on the parallel batch axis (v7x megacore) and bound the unroll."""
    if tn != N or N % 8 != 0 or B < 2:
        return 1
    cap = min(4, B // 2, max(1, budget_bytes // max(1, N * D * itemsize)))
    for tb in range(int(cap), 0, -1):
        if B % tb == 0:
            return tb
    return 1


def vlad_pooling(x, centroids, alpha=100.0, *, agg_matmul_dtype=jnp.bfloat16,
                 block_n=None, block_b=None):
    """x: (B, N, D) descriptors, centroids: (K, D) -> (B, K*D) L2-normalized.

    Pass x in its native dtype (e.g. bf16): the kernel upcasts in VMEM, so
    pre-casting to f32 in the caller only doubles HBM traffic.  The distance
    matmul always runs at f32/HIGHEST; `agg_matmul_dtype` (default bf16 with
    f32 accumulation) only affects the soft^T x aggregation matmul.
    """
    B, N, D = x.shape
    K, Dc = centroids.shape
    assert Dc == D, "centroid dim must match descriptor dim"

    # Generation-aware x-tile budget: ~4 MiB/buffer on v5e/v6e (128 MiB VMEM),
    # ~2 MiB on v7x (64 MiB VMEM, chip shared across 2 TensorCores).
    try:
        vmem_total = int(pltpu.get_tpu_info().vmem_capacity_bytes)
    except Exception:
        vmem_total = None
    x_budget = (2 << 20) if (vmem_total is not None and vmem_total <= (64 << 20)) \
        else (4 << 20)

    itemsize = jnp.dtype(x.dtype).itemsize
    tn = int(block_n) if block_n is not None else _pick_block_n(N, D, itemsize, x_budget)
    tb = int(block_b) if block_b is not None else _pick_block_b(B, N, D, tn, itemsize, x_budget)
    assert B % tb == 0
    if tb > 1:
        assert tn == N and N % 8 == 0

    # Pad clusters to a multiple of 128: zero centroids + huge ||c||^2 so the
    # padded columns get exactly-zero soft assignment and zero VLAD rows.
    Kp = _round_up(K, 128)
    c32 = centroids.astype(jnp.float32)
    c_kd = jnp.zeros((Kp, D), jnp.float32).at[:K, :].set(c32)      # (Kp, D)
    c_t = c_kd.T                                                    # (D, Kp), hoisted
    cc = jnp.full((1, Kp), _BIG_DIST2, jnp.float32).at[0, :K].set(
        jnp.sum(c32 * c32, axis=1))

    grid = (B // tb, pl.cdiv(N, tn))

    # VMEM footprint estimate (+ headroom) for the scoped limit.
    est = (2 * tb * tn * D * itemsize          # double-buffered x tile
           + 2 * (2 * Kp * D + Kp) * 4         # centroid tables + ||c||^2
           + 2 * tb * Kp * D * 4               # resident f32 output accumulator
           + tb * 8 * Kp * 4                   # ssum scratch (sublane padded)
           + 4 * tb * tn * (D + 3 * Kp))       # f32 x / dist / soft intermediates
    vmem_limit = max(est + (8 << 20), 32 << 20)
    if vmem_total is not None:
        vmem_limit = min(vmem_limit, vmem_total * 9 // 10)

    kernel = functools.partial(_vlad_kernel, alpha=float(alpha), n_total=N,
                               agg_dtype=agg_matmul_dtype)

    out = pl.pallas_call(
        kernel,
        out_shape=jax.ShapeDtypeStruct((B, Kp, D), jnp.float32),
        grid_spec=pltpu.PrefetchScalarGridSpec(
            num_scalar_prefetch=0,
            grid=grid,
            in_specs=[
                pl.BlockSpec((tb, tn, D), lambda b, n: (b, n, 0)),   # descriptors
                pl.BlockSpec((D, Kp), lambda b, n: (0, 0)),          # centroids^T
                pl.BlockSpec((Kp, D), lambda b, n: (0, 0)),          # centroids (finalize)
                pl.BlockSpec((1, Kp), lambda b, n: (0, 0)),          # ||c||^2
            ],
            out_specs=pl.BlockSpec((tb, Kp, D), lambda b, n: (b, 0, 0)),
            scratch_shapes=[pltpu.VMEM((tb, 1, Kp), jnp.float32)],   # soft column sums
        ),
        compiler_params=pltpu.CompilerParams(
            dimension_semantics=("parallel", "arbitrary"),
            vmem_limit_bytes=int(vmem_limit)),
    )(x, c_t, c_kd, cc)

    # Drop padded clusters (exact zeros) and flatten outside the kernel.
    return out[:, :K, :].reshape(B, K * D)


def _reference(x, centroids, alpha):
    x = x.astype(jnp.float32)
    c = centroids.astype(jnp.float32)
    hi = jax.lax.Precision.HIGHEST
    d2 = (jnp.sum(x * x, axis=-1, keepdims=True)
          + jnp.sum(c * c, axis=-1)[None, None, :]
          - 2.0 * jnp.einsum('bnd,kd->bnk', x, c, precision=hi))
    dist = jnp.sqrt(jnp.maximum(d2, 0.0))
    soft = jax.nn.softmax(-alpha * dist, axis=-1)
    vlad = (jnp.einsum('bnk,bnd->bkd', soft, x, precision=hi)
            - jnp.sum(soft, axis=1)[..., None] * c[None])
    vlad = vlad.reshape(x.shape[0], -1)
    nrm = jnp.linalg.norm(vlad, axis=1, keepdims=True)
    return vlad / jnp.maximum(nrm, 1e-12)


if __name__ == "__main__":
    # Small deterministic config consistent with the module's (B, N, D) forward.
    B, N, D, K = 2, 16, 32, 8
    alpha = 100.0

    key = jax.random.PRNGKey(0)
    kx, kc = jax.random.split(key)
    x = jax.random.uniform(kx, (B, N, D), dtype=jnp.float32)        # like torch.rand input
    centroids = jax.random.uniform(kc, (K, D), dtype=jnp.float32)   # like torch.rand(K, D)

    out = vlad_pooling(x, centroids, alpha=alpha)
    jax.block_until_ready(out)
    assert out.shape == (B, K * D)

    ref = _reference(x, centroids, alpha)
    assert jnp.allclose(out, ref, atol=1e-2, rtol=1e-2), "kernel deviates from reference"

    print("KERNEL_OK")
</pallas_src>

<mosaic_0001>
module attributes {stable_mosaic.version = 11 : i64} {
  func.func @_vlad_kernel(%arg0: i32, %arg1: i32, %arg2: memref<1x16x32xf32, #tpu.memory_space<vmem>>, %arg3: memref<32x128xf32, #tpu.memory_space<vmem>>, %arg4: memref<128x32xf32, #tpu.memory_space<vmem>>, %arg5: memref<1x128xf32, #tpu.memory_space<vmem>>, %arg6: memref<1x128x32xf32, #tpu.memory_space<vmem>>, %arg7: memref<1x1x128xf32, #tpu.memory_space<vmem>>) attributes {dimension_semantics = [#tpu.dimension_semantics<parallel>, #tpu.dimension_semantics<arbitrary>], iteration_bounds = array<i64: 2, 1>, scalar_prefetch = 0 : i64, scratch_operands = 1 : i64, tpu.core_type = #tpu.core_type<tc>, window_params = [{transform_indices = @transform_0, window_bounds = array<i64: 1, 16, 32>}, {pipeline_mode = #tpu.pipeline_mode<synchronous>, transform_indices = @transform_1, window_bounds = array<i64: 32, 128>}, {pipeline_mode = #tpu.pipeline_mode<synchronous>, transform_indices = @transform_2, window_bounds = array<i64: 128, 32>}, {pipeline_mode = #tpu.pipeline_mode<synchronous>, transform_indices = @transform_3, window_bounds = array<i64: 1, 128>}, {transform_indices = @transform_4, window_bounds = array<i64: 1, 128, 32>}]} {
    %c0_i32 = arith.constant 0 : i32
    %0 = arith.cmpi eq, %arg1, %c0_i32 : i32
    %1 = arith.extui %0 : i1 to i32
    %c0_i32_0 = arith.constant 0 : i32
    %2 = arith.cmpi ne, %1, %c0_i32_0 : i32
    scf.if %2 {
      %cst_29 = arith.constant 0.000000e+00 : f32
      %52 = vector.broadcast %cst_29 : f32 to vector<1x128x32xf32>
      %c0_30 = arith.constant 0 : index
      %c0_31 = arith.constant 0 : index
      %c0_32 = arith.constant 0 : index
      %53 = vector.load %arg6[%c0_30, %c0_31, %c0_32] : memref<1x128x32xf32, #tpu.memory_space<vmem>>, vector<1x128x32xf32>
      tpu.vector_store %arg6[%c0_30, %c0_31, %c0_32], %52 {strides = array<i32>} : memref<1x128x32xf32, #tpu.memory_space<vmem>>, vector<1x128x32xf32>,
      %cst_33 = arith.constant 0.000000e+00 : f32
      %54 = vector.broadcast %cst_33 : f32 to vector<1x1x128xf32>
      %c0_34 = arith.constant 0 : index
      %c0_35 = arith.constant 0 : index
      %c0_36 = arith.constant 0 : index
      %55 = vector.load %arg7[%c0_34, %c0_35, %c0_36] : memref<1x1x128xf32, #tpu.memory_space<vmem>>, vector<1x1x128xf32>
      tpu.vector_store %arg7[%c0_34, %c0_35, %c0_36], %54 {strides = array<i32>} : memref<1x1x128xf32, #tpu.memory_space<vmem>>, vector<1x1x128xf32>,
    } else {
    }
    %c0 = arith.constant 0 : index
    %c0_1 = arith.constant 0 : index
    %3 = vector.load %arg3[%c0, %c0_1] : memref<32x128xf32, #tpu.memory_space<vmem>>, vector<32x128xf32>
    %c0_2 = arith.constant 0 : index
    %c0_3 = arith.constant 0 : index
    %4 = vector.load %arg5[%c0_2, %c0_3] : memref<1x128xf32, #tpu.memory_space<vmem>>, vector<1x128xf32>
    %c0_4 = arith.constant 0 : index
    %c0_5 = arith.constant 0 : index
    %c0_6 = arith.constant 0 : index
    %5 = vector.load %arg2[%c0_4, %c0_5, %c0_6] : memref<1x16x32xf32, #tpu.memory_space<vmem>>, vector<1x16x32xf32>
    %6 = vector.shape_cast %5 : vector<1x16x32xf32> to vector<16x32xf32>
    %7 = arith.mulf %6, %6 : vector<16x32xf32>
    %cst = arith.constant dense<0.000000e+00> : vector<16xf32>
    %8 = vector.multi_reduction <add>, %7, %cst [1] : vector<16x32xf32> to vector<16xf32>
    %9 = vector.shape_cast %8 : vector<16xf32> to vector<16x1xf32>
    %cst_7 = arith.constant dense<0.000000e+00> : vector<16x128xf32>
    %10 = tpu.matmul %6, %3, %cst_7 {dimension_numbers = #tpu.dot_dimension_numbers<[1], [0], [0], [1], [0, 0, 1, 1], [], []>, precision = #tpu.contract_precision<fp32>} : vector<16x32xf32>, vector<32x128xf32>, vector<16x128xf32> -> vector<16x128xf32>
    %11 = vector.broadcast %9 : vector<16x1xf32> to vector<16x128xf32>
    %12 = vector.broadcast %4 : vector<1x128xf32> to vector<16x128xf32>
    %13 = arith.addf %11, %12 : vector<16x128xf32>
    %cst_8 = arith.constant 2.000000e+00 : f32
    %14 = vector.broadcast %cst_8 : f32 to vector<16x128xf32>
    %15 = arith.mulf %14, %10 : vector<16x128xf32>
    %16 = arith.subf %13, %15 : vector<16x128xf32>
    %cst_9 = arith.constant 0.000000e+00 : f32
    %17 = vector.broadcast %cst_9 : f32 to vector<16x128xf32>
    %18 = arith.maximumf %16, %17 : vector<16x128xf32>
    %19 = math.sqrt %18 : vector<16x128xf32>
    %cst_10 = arith.constant -1.000000e+02 : f32
    %20 = vector.broadcast %cst_10 : f32 to vector<16x128xf32>
    %21 = arith.mulf %20, %19 : vector<16x128xf32>
    %cst_11 = arith.constant dense<0xFF800000> : vector<16xf32>
    %22 = vector.multi_reduction <maximumf>, %21, %cst_11 [1] : vector<16x128xf32> to vector<16xf32>
    %23 = vector.shape_cast %22 : vector<16xf32> to vector<16x1xf32>
    %24 = vector.broadcast %23 : vector<16x1xf32> to vector<16x128xf32>
    %25 = arith.subf %21, %24 : vector<16x128xf32>
    %26 = math.exp %25 : vector<16x128xf32>
    %cst_12 = arith.constant dense<0.000000e+00> : vector<16xf32>
    %27 = vector.multi_reduction <add>, %26, %cst_12 [1] : vector<16x128xf32> to vector<16xf32>
    %28 = vector.shape_cast %27 : vector<16xf32> to vector<16x1xf32>
    %29 = tpu.reciprocal %28 {approx = true} : vector<16x1xf32> -> vector<16x1xf32>
    %30 = vector.broadcast %29 : vector<16x1xf32> to vector<16x128xf32>
    %31 = arith.mulf %26, %30 : vector<16x128xf32>
    %32 = arith.truncf %31 : vector<16x128xf32> to vector<16x128xbf16>
    %33 = arith.truncf %6 : vector<16x32xf32> to vector<16x32xbf16>
    %cst_13 = arith.constant dense<0.000000e+00> : vector<128x32xf32>
    %34 = tpu.matmul %32, %33, %cst_13 {dimension_numbers = #tpu.dot_dimension_numbers<[0], [0], [1], [1], [0, 1, 1, 1], [], []>} : vector<16x128xbf16>, vector<16x32xbf16>, vector<128x32xf32> -> vector<128x32xf32>
    %c0_14 = arith.constant 0 : index
    %c0_15 = arith.constant 0 : index
    %c0_16 = arith.constant 0 : index
    %35 = vector.load %arg6[%c0_14, %c0_15, %c0_16] : memref<1x128x32xf32, #tpu.memory_space<vmem>>, vector<1x128x32xf32>
    %36 = vector.shape_cast %35 : vector<1x128x32xf32> to vector<128x32xf32>
    %37 = arith.addf %36, %34 : vector<128x32xf32>
    %c0_17 = arith.constant 0 : index
    %c0_18 = arith.constant 0 : index
    %c0_19 = arith.constant 0 : index
    %38 = vector.load %arg6[%c0_17, %c0_18, %c0_19] : memref<1x128x32xf32, #tpu.memory_space<vmem>>, vector<1x128x32xf32>
    %39 = vector.shape_cast %38 : vector<1x128x32xf32> to vector<128x32xf32>
    %40 = vector.shape_cast %37 : vector<128x32xf32> to vector<1x128x32xf32>
    tpu.vector_store %arg6[%c0_17, %c0_18, %c0_19], %40 {strides = array<i32>} : memref<1x128x32xf32, #tpu.memory_space<vmem>>, vector<1x128x32xf32>,
    %c0_20 = arith.constant 0 : index
    %c0_21 = arith.constant 0 : index
    %c0_22 = arith.constant 0 : index
    %41 = vector.load %arg7[%c0_20, %c0_21, %c0_22] : memref<1x1x128xf32, #tpu.memory_space<vmem>>, vector<1x1x128xf32>
    %42 = vector.shape_cast %41 : vector<1x1x128xf32> to vector<1x128xf32>
    %cst_23 = arith.constant dense<0.000000e+00> : vector<128xf32>
    %43 = vector.multi_reduction <add>, %31, %cst_23 [0] : vector<16x128xf32> to vector<128xf32>
    %44 = vector.shape_cast %43 : vector<128xf32> to vector<1x128xf32>
    %45 = arith.addf %42, %44 : vector<1x128xf32>
    %c0_24 = arith.constant 0 : index
    %c0_25 = arith.constant 0 : index
    %c0_26 = arith.constant 0 : index
    %46 = vector.load %arg7[%c0_24, %c0_25, %c0_26] : memref<1x1x128xf32, #tpu.memory_space<vmem>>, vector<1x1x128xf32>
    %47 = vector.shape_cast %46 : vector<1x1x128xf32> to vector<1x128xf32>
    %48 = vector.shape_cast %45 : vector<1x128xf32> to vector<1x1x128xf32>
    tpu.vector_store %arg7[%c0_24, %c0_25, %c0_26], %48 {strides = array<i32>} : memref<1x1x128xf32, #tpu.memory_space<vmem>>, vector<1x1x128xf32>,
    %c0_i32_27 = arith.constant 0 : i32
    %49 = arith.cmpi eq, %arg1, %c0_i32_27 : i32
    %50 = arith.extui %49 : i1 to i32
    %c0_i32_28 = arith.constant 0 : i32
    %51 = arith.cmpi ne, %50, %c0_i32_28 : i32
    scf.if %51 {
      %c0_29 = arith.constant 0 : index
      %c0_30 = arith.constant 0 : index
      %52 = vector.load %arg4[%c0_29, %c0_30] : memref<128x32xf32, #tpu.memory_space<vmem>>, vector<128x32xf32>
      %c0_31 = arith.constant 0 : index
      %c0_32 = arith.constant 0 : index
      %c0_33 = arith.constant 0 : index
      %53 = vector.load %arg7[%c0_31, %c0_32, %c0_33] : memref<1x1x128xf32, #tpu.memory_space<vmem>>, vector<1x1x128xf32>
      %54 = vector.shape_cast %53 : vector<1x1x128xf32> to vector<1x128xf32>
      %55 = tpu.transpose %54, [1, 0] : vector<1x128xf32> -> vector<128x1xf32>
      %c0_34 = arith.constant 0 : index
      %c0_35 = arith.constant 0 : index
      %c0_36 = arith.constant 0 : index
      %56 = vector.load %arg6[%c0_34, %c0_35, %c0_36] : memref<1x128x32xf32, #tpu.memory_space<vmem>>, vector<1x128x32xf32>
      %57 = vector.shape_cast %56 : vector<1x128x32xf32> to vector<128x32xf32>
      %58 = vector.broadcast %55 : vector<128x1xf32> to vector<128x32xf32>
      %59 = arith.mulf %58, %52 : vector<128x32xf32>
      %60 = arith.subf %57, %59 : vector<128x32xf32>
      %61 = arith.mulf %60, %60 : vector<128x32xf32>
      %62 = vector.shape_cast %61 : vector<128x32xf32> to vector<1x128x32xf32>
      %cst_37 = arith.constant dense<0.000000e+00> : vector<1xf32>
      %63 = vector.multi_reduction <add>, %62, %cst_37 [1, 2] : vector<1x128x32xf32> to vector<1xf32>
      %64 = vector.shape_cast %63 : vector<1xf32> to vector<1x1x1xf32>
      %65 = vector.extract %64[0, 0, 0] : f32 from vector<1x1x1xf32>
      %cst_38 = arith.constant 1.000000e-24 : f32
      %66 = arith.maximumf %65, %cst_38 : f32
      %67 = math.rsqrt %66 : f32
      %68 = vector.broadcast %67 : f32 to vector<128x32xf32>
      %69 = arith.mulf %60, %68 : vector<128x32xf32>
      %c0_39 = arith.constant 0 : index
      %c0_40 = arith.constant 0 : index
      %c0_41 = arith.constant 0 : index
      %70 = vector.load %arg6[%c0_39, %c0_40, %c0_41] : memref<1x128x32xf32, #tpu.memory_space<vmem>>, vector<1x128x32xf32>
      %71 = vector.shape_cast %70 : vector<1x128x32xf32> to vector<128x32xf32>
      %72 = vector.shape_cast %69 : vector<128x32xf32> to vector<1x128x32xf32>
      tpu.vector_store %arg6[%c0_39, %c0_40, %c0_41], %72 {strides = array<i32>} : memref<1x128x32xf32, #tpu.memory_space<vmem>>, vector<1x128x32xf32>,
    } else {
    }
    return
  }
  func.func @transform_0(%arg0: i32, %arg1: i32) -> (i32, i32, i32) {
    %c0_i32 = arith.constant 0 : i32
    %c0_i32_0 = arith.constant 0 : i32
    return %arg0, %arg1, %c0_i32 : i32, i32, i32
  }
  func.func @transform_1(%arg0: i32, %arg1: i32) -> (i32, i32) {
    %c0_i32 = arith.constant 0 : i32
    %c0_i32_0 = arith.constant 0 : i32
    %c0_i32_1 = arith.constant 0 : i32
    return %c0_i32, %c0_i32_0 : i32, i32
  }
  func.func @transform_2(%arg0: i32, %arg1: i32) -> (i32, i32) {
    %c0_i32 = arith.constant 0 : i32
    %c0_i32_0 = arith.constant 0 : i32
    %c0_i32_1 = arith.constant 0 : i32
    return %c0_i32, %c0_i32_0 : i32, i32
  }
  func.func @transform_3(%arg0: i32, %arg1: i32) -> (i32, i32) {
    %c0_i32 = arith.constant 0 : i32
    %c0_i32_0 = arith.constant 0 : i32
    %c0_i32_1 = arith.constant 0 : i32
    return %c0_i32, %c0_i32_0 : i32, i32
  }
  func.func @transform_4(%arg0: i32, %arg1: i32) -> (i32, i32, i32) {
    %c0_i32 = arith.constant 0 : i32
    %c0_i32_0 = arith.constant 0 : i32
    %c0_i32_1 = arith.constant 0 : i32
    return %arg0, %c0_i32, %c0_i32_0 : i32, i32, i32
  }
}

</mosaic_0001>

<llo_original>
// kernel: tpu_custom_call.1
$region0: #{tpu_custom_call.1}
  #allocation0 [shape = 'u32[]', space=smem, size = 0x4, offset = 0x4, fixed_abs, tag = 'smem constant byte address 0x4 - core index']
  #allocation1 [shape = 'u32[72,128]{1,0:T(1,128)}', space=vmem, size = 0x9000, scoped, tag = 'internal scratch']
  #allocation2 [shape = 'f32[1,1,128]{2,1,0:T(1,128)}', space=vmem, size = 0x200, scoped, tag = 'scratch operand']
  %s0 = inlined_call_operand.vmem [shape: f32[2,16,32], index: 0, kind: input, shape index: {}]
  %s1 = inlined_call_operand.vmem [shape: f32[32,128], index: 1, kind: input, shape index: {}]
  %s2 = inlined_call_operand.vmem [shape: f32[128,32], index: 2, kind: input, shape index: {}]
  %s3 = inlined_call_operand.vmem [shape: f32[1,128], index: 3, kind: input, shape index: {}]
  %s4 = inlined_call_operand.vmem [shape: f32[2,128,32], index: 4, kind: output, shape index: {}]
  %s5 = sld [smem:[#allocation0]]
  $region57: #{tpu_custom_call.1} parent=0
    _
  %s7 = ssub.s32 1, %s5
  %s8 = scalar_select 0, %s7, %s5
  loop: start=0, step=1, limit=4
  $region2: #{tpu_custom_call.1} parent=0 // loop_pre_header
    _
  $region3: #{tpu_custom_call.1} parent=0 // loop_header
    %s10 = sphi 0, %s14
    %p11 = scmp.ge.s32.totalorder %s10, 4
    %s17 = sphi 0, %s29
    %s18 = sphi 0, %s25
    %s19 = sphi 0, %s17
    %s20 = sphi 0, %s18
    %s21 = sphi 0, %s19
    %s22 = sphi 0, %s20
    %s34 = sphi 0, %s36
    %s37 = sphi 0, %s34
    %s38 = sphi 0, %s37
    %s54 = sphi 0, %s38
    %s58 = sphi 0, %s58
    %s60 = sphi 0, %s58
    %s61 = sphi 0, %s60
    %s75 = sphi 0, %s61
    %s79 = sphi 0, %s79
    %s81 = sphi 0, %s79
    %s82 = sphi 0, %s81
    %s96 = sphi 0, %s82
    %s100 = sphi 0, %s100
    %s102 = sphi 0, %s100
    %s103 = sphi 0, %s102
    %s117 = sphi 0, %s103
    %s123 = sphi 0, %s125
    %s126 = sphi 0, %s123
    %s127 = sphi 0, %s126
    %s143 = sphi 0, %s127
  $region4: #{tpu_custom_call.1} parent=0 // loop_header_branch
    %13 = sbr.rel (%p11) target = $region8
  $region5: #{tpu_custom_call.1} parent=0 // loop_body
    %s15 = ssub.s32 %s10, 1
    %s16 = ssub.s32 %s10, 2
    %s23 = sadd.s32 1, %s18
    %p24 = scmp.ge.s32.totalorder %s23, 1
    %s25 = scalar_select %p24, 0, %s23
    %s26 = sadd.s32 1, %s17
    %s27 = scalar_select %p24, %s26, %s17
    %p28 = scmp.ge.s32.totalorder %s27, 2
    %s29 = scalar_select %p28, 0, %s27
    %s30 = ssub.s32 %s17, %s29
    %s31 = ssub.s32 %s18, %s25
    %s32 = sor.u32 %s30, %s31
    %p33 = scmp.eq.s32.totalorder %s32, 0
    %s35 = sadd.s32 %s34, 1
    %s36 = scalar_select %p33, %s34, %s35
    %p39 = pneg %p33
    %p40 = scmp.eq.s32.totalorder %s10, 1
    %p41 = por %p39, %p40
    %p42 = scmp.ne.s32.totalorder %s34, %s37
    %p43 = scmp.eq.s32.totalorder %s10, 0
    %p44 = por %p42, %p43
    %p45 = scmp.ne.s32.totalorder %s34, %s37
    %p46 = scmp.eq.s32.totalorder %s15, 1
    %p47 = por %p45, %p46
    %p48 = scmp.ne.s32.totalorder %s37, %s38
    %p49 = scmp.eq.s32.totalorder %s15, 0
    %p50 = por %p48, %p49
    %p51 = scmp.ne.s32.totalorder %s37, %s38
    %p52 = scmp.eq.s32.totalorder %s16, 1
    %p53 = por %p51, %p52
    %p55 = scmp.ne.s32.totalorder %s38, %s54
    %p56 = scmp.eq.s32.totalorder %s16, 0
    %p57 = por %p55, %p56
    %s59 = sadd.s32 %s58, 1
    %p62 = scmp.eq.s32.totalorder %s10, 1
    %p63 = scmp.ne.s32.totalorder %s58, %s60
    %p64 = scmp.eq.s32.totalorder %s10, 0
    %p65 = por %p63, %p64
    %p66 = scmp.ne.s32.totalorder %s58, %s60
    %p67 = scmp.eq.s32.totalorder %s15, 1
    %p68 = por %p66, %p67
    %p69 = scmp.ne.s32.totalorder %s60, %s61
    %p70 = scmp.eq.s32.totalorder %s15, 0
    %p71 = por %p69, %p70
    %p72 = scmp.ne.s32.totalorder %s60, %s61
    %p73 = scmp.eq.s32.totalorder %s16, 1
    %p74 = por %p72, %p73
    %p76 = scmp.ne.s32.totalorder %s61, %s75
    %p77 = scmp.eq.s32.totalorder %s16, 0
    %p78 = por %p76, %p77
    %s80 = sadd.s32 %s79, 1
    %p83 = scmp.eq.s32.totalorder %s10, 1
    %p84 = scmp.ne.s32.totalorder %s79, %s81
    %p85 = scmp.eq.s32.totalorder %s10, 0
    %p86 = por %p84, %p85
    %p87 = scmp.ne.s32.totalorder %s79, %s81
    %p88 = scmp.eq.s32.totalorder %s15, 1
    %p89 = por %p87, %p88
    %p90 = scmp.ne.s32.totalorder %s81, %s82
    %p91 = scmp.eq.s32.totalorder %s15, 0
    %p92 = por %p90, %p91
    %p93 = scmp.ne.s32.totalorder %s81, %s82
    %p94 = scmp.eq.s32.totalorder %s16, 1
    %p95 = por %p93, %p94
    %p97 = scmp.ne.s32.totalorder %s82, %s96
    %p98 = scmp.eq.s32.totalorder %s16, 0
    %p99 = por %p97, %p98
    %s101 = sadd.s32 %s100, 1
    %p104 = scmp.eq.s32.totalorder %s10, 1
    %p105 = scmp.ne.s32.totalorder %s100, %s102
    %p106 = scmp.eq.s32.totalorder %s10, 0
    %p107 = por %p105, %p106
    %p108 = scmp.ne.s32.totalorder %s100, %s102
    %p109 = scmp.eq.s32.totalorder %s15, 1
    %p110 = por %p108, %p109
    %p111 = scmp.ne.s32.totalorder %s102, %s103
    %p112 = scmp.eq.s32.totalorder %s15, 0
    %p113 = por %p111, %p112
    %p114 = scmp.ne.s32.totalorder %s102, %s103
    %p115 = scmp.eq.s32.totalorder %s16, 1
    %p116 = por %p114, %p115
    %p118 = scmp.ne.s32.totalorder %s103, %s117
    %p119 = scmp.eq.s32.totalorder %s16, 0
    %p120 = por %p118, %p119
    %s121 = ssub.s32 %s17, %s29
    %p122 = scmp.eq.s32.totalorder %s121, 0
    %s124 = sadd.s32 %s123, 1
    %s125 = scalar_select %p122, %s123, %s124
    %p128 = pneg %p122
    %p129 = scmp.eq.s32.totalorder %s10, 1
    %p130 = por %p128, %p129
    %p131 = scmp.ne.s32.totalorder %s123, %s126
    %p132 = scmp.eq.s32.totalorder %s10, 0
    %p133 = por %p131, %p132
    %p134 = scmp.ne.s32.totalorder %s123, %s126
    %p135 = scmp.eq.s32.totalorder %s15, 1
    %p136 = por %p134, %p135
    %p137 = scmp.ne.s32.totalorder %s126, %s127
    %p138 = scmp.eq.s32.totalorder %s15, 0
    %p139 = por %p137, %p138
    %p140 = scmp.ne.s32.totalorder %s126, %s127
    %p141 = scmp.eq.s32.totalorder %s16, 1
    %p142 = por %p140, %p141
    %p144 = scmp.ne.s32.totalorder %s127, %s143
    %p145 = scmp.eq.s32.totalorder %s16, 0
    %p146 = por %p144, %p145
    %p147 = scmp.le.s32.totalorder 1, %s10
    %p148 = scmp.lt.s32.totalorder %s10, 3
    %p149 = pnand %p147, %p148
    %p150 = pneg %p149
    // Predicated region
    $region9: #{tpu_custom_call.1} parent=5 // pred_check
      _
    $region10: #{tpu_custom_call.1} parent=5 // pred_check_branch
      %152 = sbr.rel (%p149) target = $region12
    $region11: #{tpu_custom_call.1} parent=5 // pred_region
      %s153 = ssub.s32 %s10, 1
      // Predicated region
      $region13: #{tpu_custom_call.1} parent=11 // pred_check
        %p154 = pneg %p71
      $region14: #{tpu_custom_call.1} parent=11 // pred_check_branch
        %156 = sbr.rel (%p154) target = $region16
      $region15: #{tpu_custom_call.1} parent=11 // pred_region
        _
      $region16: #{tpu_custom_call.1} parent=11 // pred_fallthru
        _
      // Predicated region
      $region17: #{tpu_custom_call.1} parent=11 // pred_check
        %p157 = pneg %p92
      $region18: #{tpu_custom_call.1} parent=11 // pred_check_branch
        %159 = sbr.rel (%p157) target = $region20
      $region19: #{tpu_custom_call.1} parent=11 // pred_region
        _
      $region20: #{tpu_custom_call.1} parent=11 // pred_fallthru
        _
      // Predicated region
      $region21: #{tpu_custom_call.1} parent=11 // pred_check
        %p160 = pneg %p113
      $region22: #{tpu_custom_call.1} parent=11 // pred_check_branch
        %162 = sbr.rel (%p160) target = $region24
      $region23: #{tpu_custom_call.1} parent=11 // pred_region
        _
      $region24: #{tpu_custom_call.1} parent=11 // pred_fallthru
        _
    $region12: #{tpu_custom_call.1} parent=5 // pred_fallthru
      _
    %p163 = scmp.lt.s32.totalorder %s10, 2
    // Predicated region
    $region25: #{tpu_custom_call.1} parent=5 // pred_check
      %p164 = pneg %p163
    $region26: #{tpu_custom_call.1} parent=5 // pred_check_branch
      %166 = sbr.rel (%p164) target = $region28
    $region27: #{tpu_custom_call.1} parent=5 // pred_region
      // Predicated region
      $region29: #{tpu_custom_call.1} parent=27 // pred_check
        %p167 = pneg %p44
      $region30: #{tpu_custom_call.1} parent=27 // pred_check_branch
        %169 = sbr.rel (%p167) target = $region32
      $region31: #{tpu_custom_call.1} parent=27 // pred_region
        %s170 = smul.u32 2, %s18
        %p171 = scmp.lt.s32.totalorder %s17, 1
        %s172 = scalar_select %p171, %s17, 1
        %p173 = scmp.lt.s32.totalorder %s170, 1
        %s174 = scalar_select %p173, %s170, 1
        %s175 = smul.addr %s172, 2
        %s176 = sadd.s32 %s174, %s175
        %s177 = smul.addr %s176, 8
        %s178 = scalar_lea.vmem %s0, %s177
        %s179 = smul.u32 2, %s18
      $region32: #{tpu_custom_call.1} parent=27 // pred_fallthru
        _
    $region28: #{tpu_custom_call.1} parent=5 // pred_fallthru
      _
    %p180 = scmp.le.s32.totalorder 1, %s10
    %p181 = scmp.lt.s32.totalorder %s10, 3
    %p182 = pnand %p180, %p181
    %p183 = pneg %p182
    // Predicated region
    $region33: #{tpu_custom_call.1} parent=5 // pred_check
      _
    $region34: #{tpu_custom_call.1} parent=5 // pred_check_branch
      %185 = sbr.rel (%p182) target = $region36
    $region35: #{tpu_custom_call.1} parent=5 // pred_region
      %s186 = ssub.s32 %s10, 1
      %s187 = smul.u32 2, %s20
      %p188 = scmp.lt.s32.totalorder %s19, 1
      %s189 = scalar_select %p188, %s19, 1
      %p190 = scmp.lt.s32.totalorder %s187, 1
      %s191 = scalar_select %p190, %s187, 1
      %s192 = smul.addr %s189, 2
      %s193 = sadd.s32 %s191, %s192
      %s194 = smul.addr %s193, 8
      %s195 = scalar_lea.vmem %s0, %s194
      %p196 = pneg %p50
      %p197 = pneg %p47
      %p198 = pneg %p71
      %p199 = pneg %p68
      %p200 = pneg %p92
      %p201 = pneg %p89
      %p202 = pneg %p113
      %p203 = pneg %p110
      %p204 = pneg %p139
      %p205 = pneg %p136
      %p206 = scmp.lt.s32.totalorder %s19, 1
      %s207 = scalar_select %p206, %s19, 1
      %s208 = smul.addr %s207, 16
      %s209 = smul.addr %s208, 8
      %s210 = scalar_lea.vmem %s4, %s209
      %s211 = smul.u32 2, %s20
      %p212 = scmp.lt.s32.totalorder %s19, 1
      %s213 = scalar_select %p212, %s19, 1
      %p214 = scmp.lt.s32.totalorder %s211, 1
      %s215 = scalar_select %p214, %s211, 1
      %s216 = smul.addr %s213, 2
      %s217 = sadd.s32 %s215, %s216
      %s218 = smul.addr %s217, 8
      %s219 = scalar_lea.vmem %s0, %s218
      %s220 = smul.u32 2, %s20
      %p221 = scmp.lt.s32.totalorder %s19, 1
      %s222 = scalar_select %p221, %s19, 1
      %s223 = smul.addr %s222, 16
      %s224 = smul.addr %s223, 8
      %s225 = scalar_lea.vmem %s4, %s224
      %p227 = scmp.eq.s32.totalorder %s20, 0
      // Predicated region
      $region37: #{tpu_custom_call.1} parent=35 // pred_check
        %p228 = pneg %p227
      $region38: #{tpu_custom_call.1} parent=35 // pred_check_branch
        %230 = sbr.rel (%p228) target = $region40
      $region39: #{tpu_custom_call.1} parent=35 // pred_region
        %vm231 = vcmask 261120
        %232 = vst.msk [vmem:[%s225] sm:$0xff] %vm231, 0.0
        %233 = vst.msk [vmem:[%s225 + $0x8] sm:$0xff] %vm231, 0.0
        %234 = vst.msk [vmem:[%s225 + $0x10] sm:$0xff] %vm231, 0.0
        %235 = vst.msk [vmem:[%s225 + $0x18] sm:$0xff] %vm231, 0.0
        %236 = vst.msk [vmem:[%s225 + $0x20] sm:$0xff] %vm231, 0.0
        %237 = vst.msk [vmem:[%s225 + $0x28] sm:$0xff] %vm231, 0.0
        %238 = vst.msk [vmem:[%s225 + $0x30] sm:$0xff] %vm231, 0.0
        %239 = vst.msk [vmem:[%s225 + $0x38] sm:$0xff] %vm231, 0.0
        %240 = vst.msk [vmem:[%s225 + $0x40] sm:$0xff] %vm231, 0.0
        %241 = vst.msk [vmem:[%s225 + $0x48] sm:$0xff] %vm231, 0.0
        %242 = vst.msk [vmem:[%s225 + $0x50] sm:$0xff] %vm231, 0.0
        %243 = vst.msk [vmem:[%s225 + $0x58] sm:$0xff] %vm231, 0.0
        %244 = vst.msk [vmem:[%s225 + $0x60] sm:$0xff] %vm231, 0.0
        %245 = vst.msk [vmem:[%s225 + $0x68] sm:$0xff] %vm231, 0.0
        %246 = vst.msk [vmem:[%s225 + $0x70] sm:$0xff] %vm231, 0.0
        %247 = vst.msk [vmem:[%s225 + $0x78] sm:$0xff] %vm231, 0.0
        %248 = vst [vmem:[#allocation2] sm:$0x1] 0.0
      $region40: #{tpu_custom_call.1} parent=35 // pred_fallthru
        _
      %v249 = vld [vmem:[%s1] sm:$0xff]
      %v250 = vld [vmem:[%s1 + $0x8] sm:$0xff]
      %v251 = vld [vmem:[%s1 + $0x10] sm:$0xff]
      %v252 = vld [vmem:[%s1 + $0x18] sm:$0xff]
      %v253 = vld [vmem:[%s3] sm:$0x1]
      %v254 = vld [vmem:[%s219] sm:$0xff]
      %v255 = vld [vmem:[%s219 + $0x8] sm:$0xff]
      %v256 = vmul.f32 %v254, %v254
      %v257 = vmul.f32 %v255, %v255
      %vm258 = vcmask 261120
      %v259 = vsel %vm258, %v256, 0.0
      %260 = vadd.xlane.f32.xlu0 %v259
      %v261 = vpop.xlane.xlu0 %260
      %v262 = vsel %vm258, %v257, 0.0
      %263 = vadd.xlane.f32.xlu0 %v262
      %v264 = vpop.xlane.xlu0 %263
      %v266 = vsel %vm258, %v254, 0
      %v269 = vsel %vm258, %v255, 0
      %271 = vmatpush.msra.mxu0 0.0
      %272 = vmatpush.msra.mxu0 0.0
      %273 = vmatpush.msra.mxu0 0.0
      %274 = vmatpush.msra.mxu0 0.0
      %275 = vmatpush.msra.mxu0 0.0
      %276 = vmatpush.msra.mxu0 0.0
      %277 = vmatpush.msra.mxu0 0.0
      %278 = vmatpush.msra.mxu0 0.0
      %279 = vmatpush.msra.mxu0 0.0
      %280 = vmatpush.msra.mxu0 0.0
      %281 = vmatpush.msra.mxu0 0.0
      %282 = vmatpush.msra.mxu0 0.0
      %v283 = vand.u32 %v252, 4294901760
      %284 = vmatpush.msra.mxu0 %v283
      %v285 = vand.u32 %v251, 4294901760
      %286 = vmatpush.msra.mxu0 %v285
      %v287 = vand.u32 %v250, 4294901760
      %288 = vmatpush.msra.mxu0 %v287
      %v289 = vand.u32 %v249, 4294901760
      %290 = vmatpush.msra.mxu0 %v289
      %v291 = vand.u32 %v266, 4294901760
      %v292 = vsub.f32 %v266, %v291
      %v293 = vand.u32 %v292, 4294901760
      %v294 = vsub.f32 %v292, %v293
      %v295 = vand.u32 %v294, 4294901760
      %296 = vmatmul.f32.gmra.mxu0 %v295
      %v297 = vpop.f32.mrf.mxu0
      %v298 = vadd.f32 0.0, %v297
      %v299 = vand.u32 %v269, 4294901760
      %v300 = vsub.f32 %v269, %v299
      %v301 = vand.u32 %v300, 4294901760
      %v302 = vsub.f32 %v300, %v301
      %v303 = vand.u32 %v302, 4294901760
      %304 = vmatmul.f32.gmra.mxu0 %v303
      %v305 = vpop.f32.mrf.mxu0
      %v306 = vadd.f32 0.0, %v305
      %307 = vdwg.mxu0
      %308 = vmatpush.msra.mxu0 0.0
      %309 = vmatpush.msra.mxu0 0.0
      %310 = vmatpush.msra.mxu0 0.0
      %311 = vmatpush.msra.mxu0 0.0
      %312 = vmatpush.msra.mxu0 0.0
      %313 = vmatpush.msra.mxu0 0.0
      %314 = vmatpush.msra.mxu0 0.0
      %315 = vmatpush.msra.mxu0 0.0
      %316 = vmatpush.msra.mxu0 0.0
      %317 = vmatpush.msra.mxu0 0.0
      %318 = vmatpush.msra.mxu0 0.0
      %319 = vmatpush.msra.mxu0 0.0
      %v320 = vand.u32 %v252, 4294901760
      %v321 = vsub.f32 %v252, %v320
      %v322 = vand.u32 %v321, 4294901760
      %v323 = vsub.f32 %v321, %v322
      %v324 = vand.u32 %v323, 4294901760
      %325 = vmatpush.msra.mxu0 %v324
      %v326 = vand.u32 %v251, 4294901760
      %v327 = vsub.f32 %v251, %v326
      %v328 = vand.u32 %v327, 4294901760
      %v329 = vsub.f32 %v327, %v328
      %v330 = vand.u32 %v329, 4294901760
      %331 = vmatpush.msra.mxu0 %v330
      %v332 = vand.u32 %v250, 4294901760
      %v333 = vsub.f32 %v250, %v332
      %v334 = vand.u32 %v333, 4294901760
      %v335 = vsub.f32 %v333, %v334
      %v336 = vand.u32 %v335, 4294901760
      %337 = vmatpush.msra.mxu0 %v336
      %v338 = vand.u32 %v249, 4294901760
      %v339 = vsub.f32 %v249, %v338
      %v340 = vand.u32 %v339, 4294901760
      %v341 = vsub.f32 %v339, %v340
      %v342 = vand.u32 %v341, 4294901760
      %343 = vmatpush.msra.mxu0 %v342
      %v344 = vand.u32 %v266, 4294901760
      %345 = vmatmul.f32.gmra.mxu0 %v344
      %v346 = vpop.f32.mrf.mxu0
      %v347 = vadd.f32 %v298, %v346
      %v348 = vand.u32 %v269, 4294901760
      %349 = vmatmul.f32.gmra.mxu0 %v348
      %v350 = vpop.f32.mrf.mxu0
      %v351 = vadd.f32 %v306, %v350
      %352 = vdwg.mxu0
      %353 = vmatpush.msra.mxu0 0.0
      %354 = vmatpush.msra.mxu0 0.0
      %355 = vmatpush.msra.mxu0 0.0
      %356 = vmatpush.msra.mxu0 0.0
      %357 = vmatpush.msra.mxu0 0.0
      %358 = vmatpush.msra.mxu0 0.0
      %359 = vmatpush.msra.mxu0 0.0
      %360 = vmatpush.msra.mxu0 0.0
      %361 = vmatpush.msra.mxu0 0.0
      %362 = vmatpush.msra.mxu0 0.0
      %363 = vmatpush.msra.mxu0 0.0
      %364 = vmatpush.msra.mxu0 0.0
      %v365 = vand.u32 %v252, 4294901760
      %v366 = vsub.f32 %v252, %v365
      %367 = vmatpush.msra.mxu0 %v366
      %v368 = vand.u32 %v251, 4294901760
      %v369 = vsub.f32 %v251, %v368
      %370 = vmatpush.msra.mxu0 %v369
      %v371 = vand.u32 %v250, 4294901760
      %v372 = vsub.f32 %v250, %v371
      %373 = vmatpush.msra.mxu0 %v372
      %v374 = vand.u32 %v249, 4294901760
      %v375 = vsub.f32 %v249, %v374
      %376 = vmatpush.msra.mxu0 %v375
      %v377 = vand.u32 %v266, 4294901760
      %v378 = vsub.f32 %v266, %v377
      %379 = vmatmul.f32.gmra.mxu0 %v378
      %v380 = vpop.f32.mrf.mxu0
      %v381 = vadd.f32 %v347, %v380
      %v382 = vand.u32 %v269, 4294901760
      %v383 = vsub.f32 %v269, %v382
      %384 = vmatmul.f32.gmra.mxu0 %v383
      %v385 = vpop.f32.mrf.mxu0
      %v386 = vadd.f32 %v351, %v385
      %387 = vdwg.mxu0
      %388 = vmatpush.msra.mxu0 0.0
      %389 = vmatpush.msra.mxu0 0.0
      %390 = vmatpush.msra.mxu0 0.0
      %391 = vmatpush.msra.mxu0 0.0
      %392 = vmatpush.msra.mxu0 0.0
      %393 = vmatpush.msra.mxu0 0.0
      %394 = vmatpush.msra.mxu0 0.0
      %395 = vmatpush.msra.mxu0 0.0
      %396 = vmatpush.msra.mxu0 0.0
      %397 = vmatpush.msra.mxu0 0.0
      %398 = vmatpush.msra.mxu0 0.0
      %399 = vmatpush.msra.mxu0 0.0
      %v400 = vand.u32 %v252, 4294901760
      %401 = vmatpush.msra.mxu0 %v400
      %v402 = vand.u32 %v251, 4294901760
      %403 = vmatpush.msra.mxu0 %v402
      %v404 = vand.u32 %v250, 4294901760
      %405 = vmatpush.msra.mxu0 %v404
      %v406 = vand.u32 %v249, 4294901760
      %407 = vmatpush.msra.mxu0 %v406
      %v408 = vand.u32 %v266, 4294901760
      %v409 = vsub.f32 %v266, %v408
      %v410 = vand.u32 %v409, 4294901760
      %411 = vmatmul.f32.gmra.mxu0 %v410
      %v412 = vpop.f32.mrf.mxu0
      %v413 = vadd.f32 %v381, %v412
      %v414 = vand.u32 %v269, 4294901760
      %v415 = vsub.f32 %v269, %v414
      %v416 = vand.u32 %v415, 4294901760
      %417 = vmatmul.f32.gmra.mxu0 %v416
      %v418 = vpop.f32.mrf.mxu0
      %v419 = vadd.f32 %v386, %v418
      %420 = vdwg.mxu0
      %421 = vmatpush.msra.mxu0 0.0
      %422 = vmatpush.msra.mxu0 0.0
      %423 = vmatpush.msra.mxu0 0.0
      %424 = vmatpush.msra.mxu0 0.0
      %425 = vmatpush.msra.mxu0 0.0
      %426 = vmatpush.msra.mxu0 0.0
      %427 = vmatpush.msra.mxu0 0.0
      %428 = vmatpush.msra.mxu0 0.0
      %429 = vmatpush.msra.mxu0 0.0
      %430 = vmatpush.msra.mxu0 0.0
      %431 = vmatpush.msra.mxu0 0.0
      %432 = vmatpush.msra.mxu0 0.0
      %v433 = vand.u32 %v252, 4294901760
      %v434 = vsub.f32 %v252, %v433
      %v435 = vand.u32 %v434, 4294901760
      %436 = vmatpush.msra.mxu0 %v435
      %v437 = vand.u32 %v251, 4294901760
      %v438 = vsub.f32 %v251, %v437
      %v439 = vand.u32 %v438, 4294901760
      %440 = vmatpush.msra.mxu0 %v439
      %v441 = vand.u32 %v250, 4294901760
      %v442 = vsub.f32 %v250, %v441
      %v443 = vand.u32 %v442, 4294901760
      %444 = vmatpush.msra.mxu0 %v443
      %v445 = vand.u32 %v249, 4294901760
      %v446 = vsub.f32 %v249, %v445
      %v447 = vand.u32 %v446, 4294901760
      %448 = vmatpush.msra.mxu0 %v447
      %v449 = vand.u32 %v266, 4294901760
      %450 = vmatmul.f32.gmra.mxu0 %v449
      %v451 = vpop.f32.mrf.mxu0
      %v452 = vadd.f32 %v413, %v451
      %v453 = vand.u32 %v269, 4294901760
      %454 = vmatmul.f32.gmra.mxu0 %v453
      %v455 = vpop.f32.mrf.mxu0
      %v456 = vadd.f32 %v419, %v455
      %457 = vdwg.mxu0
      %458 = vmatpush.msra.mxu0 0.0
      %459 = vmatpush.msra.mxu0 0.0
      %460 = vmatpush.msra.mxu0 0.0
      %461 = vmatpush.msra.mxu0 0.0
      %462 = vmatpush.msra.mxu0 0.0
      %463 = vmatpush.msra.mxu0 0.0
      %464 = vmatpush.msra.mxu0 0.0
      %465 = vmatpush.msra.mxu0 0.0
      %466 = vmatpush.msra.mxu0 0.0
      %467 = vmatpush.msra.mxu0 0.0
      %468 = vmatpush.msra.mxu0 0.0
      %469 = vmatpush.msra.mxu0 0.0
      %v470 = vand.u32 %v252, 4294901760
      %471 = vmatpush.msra.mxu0 %v470
      %v472 = vand.u32 %v251, 4294901760
      %473 = vmatpush.msra.mxu0 %v472
      %v474 = vand.u32 %v250, 4294901760
      %475 = vmatpush.msra.mxu0 %v474
      %v476 = vand.u32 %v249, 4294901760
      %477 = vmatpush.msra.mxu0 %v476
      %v478 = vand.u32 %v266, 4294901760
      %479 = vmatmul.f32.gmra.mxu0 %v478
      %v480 = vpop.f32.mrf.mxu0
      %v481 = vadd.f32 %v452, %v480
      %v482 = vand.u32 %v269, 4294901760
      %483 = vmatmul.f32.gmra.mxu0 %v482
      %v484 = vpop.f32.mrf.mxu0
      %v485 = vadd.f32 %v456, %v484
      %486 = vdwg.mxu0
      %v488 = vperm.slane %v253, 0
      %v490 = vadd.f32 %v261, %v488
      %v491 = vadd.f32 %v264, %v488
      %v492 = vmul.f32 %v481, 2.0
      %v493 = vmul.f32 %v485, 2.0
      %v494 = vsub.f32 %v490, %v492
      %v495 = vsub.f32 %v491, %v493
      %v496 = vmax.f32 %v494, 0.0
      %v497 = vmax.f32 %v495, 0.0
      %v498 = vrsqrt.pop %v496
      %v499 = vmul.f32 %v498, %v496
      %v500 = vmul.f32 %v499, %v498
      %v501 = vmul.f32 0.5, %v500
      %v502 = vsub.f32 1.5, %v501
      %v503 = vmul.f32 %v498, %v502
      %v504 = vmul.f32 %v496, %v503
      %vm505 = vcmp.eq.f32.partialorder %v496, inf
      %v506 = vsel %vm505, %v496, %v504
      %vm507 = vcmp.eq.f32.partialorder %v496, 0.0
      %v508 = vand.u32 %v496, 2147483648
      %v509 = vsel %vm507, %v508, %v506
      %v510 = vrsqrt.pop %v497
      %v511 = vmul.f32 %v510, %v497
      %v512 = vmul.f32 %v511, %v510
      %v513 = vmul.f32 0.5, %v512
      %v514 = vsub.f32 1.5, %v513
      %v515 = vmul.f32 %v510, %v514
      %v516 = vmul.f32 %v497, %v515
      %vm517 = vcmp.eq.f32.partialorder %v497, inf
      %v518 = vsel %vm517, %v497, %v516
      %vm519 = vcmp.eq.f32.partialorder %v497, 0.0
      %v520 = vand.u32 %v497, 2147483648
      %v521 = vsel %vm519, %v520, %v518
      %v522 = vmul.f32 %v509, -100.0
      %v523 = vmul.f32 %v521, -100.0
      %524 = vmax.xlane.f32.xlu0 %v522
      %v525 = vpop.xlane.xlu0 %524
      %526 = vmax.xlane.f32.xlu0 %v523
      %v527 = vpop.xlane.xlu0 %526
      %v528 = vsub.f32 %v522, %v525
      %v529 = vsub.f32 %v523, %v527
      %v530 = vmul.f32 %v528, 1.442695
      %v531 = vpow.pop %v530
      %v532 = vmul.f32 %v529, 1.442695
      %v533 = vpow.pop %v532
      %534 = vadd.xlane.f32.xlu0 %v531
      %v535 = vpop.xlane.xlu0 %534
      %536 = vadd.xlane.f32.xlu0 %v533
      %v537 = vpop.xlane.xlu0 %536
      %v538 = vrcp.pop %v535
      %v539 = vrcp.pop %v537
      %v540 = vmul.f32 %v531, %v538
      %v541 = vmul.f32 %v533, %v539
      %v542 = vpack.c.bf16 %v541, %v540
      %v543 = vpack.c.bf16 %v255, %v254
      %544 = vxpose.xlu0.c.b16.start [1/8] %v542, 128
      %545 = vxpose.xlu0.c.b16.cont [2/8] 0, 128
      %546 = vxpose.xlu0.c.b16.cont [3/8] 0, 128
      %547 = vxpose.xlu0.c.b16.cont [4/8] 0, 128
      %548 = vxpose.xlu0.c.b16.cont [5/8] 0, 128
      %549 = vxpose.xlu0.c.b16.cont [6/8] 0, 128
      %550 = vxpose.xlu0.c.b16.cont [7/8] 0, 128
      %551 = vxpose.xlu0.c.b16.end [8/8] 0, 128
      %v552 = vpop.trf.xlu0
      %v553 = vpop.trf.xlu0
      %v554 = vpop.trf.xlu0
      %v555 = vpop.trf.xlu0
      %v556 = vpop.trf.xlu0
      %v557 = vpop.trf.xlu0
      %v558 = vpop.trf.xlu0
      %v559 = vpop.trf.xlu0
      %vm560 = vcmask 130048
      %v562 = vsel %vm560, %v552, 0
      %v565 = vsel %vm560, %v553, 0
      %v568 = vsel %vm560, %v554, 0
      %v571 = vsel %vm560, %v555, 0
      %v574 = vsel %vm560, %v556, 0
      %v577 = vsel %vm560, %v557, 0
      %v580 = vsel %vm560, %v558, 0
      %v583 = vsel %vm560, %v559, 0
      %585 = vmatpush.bf16.msra.mxu0 0
      %586 = vmatpush.bf16.msra.mxu0 0
      %587 = vmatpush.bf16.msra.mxu0 0
      %588 = vmatpush.bf16.msra.mxu0 0
      %589 = vmatpush.bf16.msra.mxu0 0
      %590 = vmatpush.bf16.msra.mxu0 0
      %591 = vmatpush.bf16.msra.mxu0 0
      %592 = vmatpush.bf16.msra.mxu0 %v543
      %593 = vmatmul.bf16.gmra.mxu0 %v562
      %v594 = vpop.f32.mrf.mxu0
      %v595 = vadd.f32 0.0, %v594
      %v596 = vpop.f32.mrf.mxu0
      %v597 = vadd.f32 0.0, %v596
      %598 = vmatmul.bf16.gmra.mxu0 %v565
      %v599 = vpop.f32.mrf.mxu0
      %v600 = vadd.f32 0.0, %v599
      %v601 = vpop.f32.mrf.mxu0
      %v602 = vadd.f32 0.0, %v601
      %603 = vmatmul.bf16.gmra.mxu0 %v568
      %v604 = vpop.f32.mrf.mxu0
      %v605 = vadd.f32 0.0, %v604
      %v606 = vpop.f32.mrf.mxu0
      %v607 = vadd.f32 0.0, %v606
      %608 = vmatmul.bf16.gmra.mxu0 %v571
      %v609 = vpop.f32.mrf.mxu0
      %v610 = vadd.f32 0.0, %v609
      %v611 = vpop.f32.mrf.mxu0
      %v612 = vadd.f32 0.0, %v611
      %613 = vmatmul.bf16.gmra.mxu0 %v574
      %v614 = vpop.f32.mrf.mxu0
      %v615 = vadd.f32 0.0, %v614
      %v616 = vpop.f32.mrf.mxu0
      %v617 = vadd.f32 0.0, %v616
      %618 = vmatmul.bf16.gmra.mxu0 %v577
      %v619 = vpop.f32.mrf.mxu0
      %v620 = vadd.f32 0.0, %v619
      %v621 = vpop.f32.mrf.mxu0
      %v622 = vadd.f32 0.0, %v621
      %623 = vmatmul.bf16.gmra.mxu0 %v580
      %v624 = vpop.f32.mrf.mxu0
      %v625 = vadd.f32 0.0, %v624
      %v626 = vpop.f32.mrf.mxu0
      %v627 = vadd.f32 0.0, %v626
      %628 = vmatmul.bf16.gmra.mxu0 %v583
      %v629 = vpop.f32.mrf.mxu0
      %v630 = vadd.f32 0.0, %v629
      %v631 = vpop.f32.mrf.mxu0
      %v632 = vadd.f32 0.0, %v631
      %633 = vdwg.mxu0
      %v634 = vld [vmem:[%s225] sm:$0xff]
      %v635 = vld [vmem:[%s225 + $0x8] sm:$0xff]
      %v636 = vld [vmem:[%s225 + $0x10] sm:$0xff]
      %v637 = vld [vmem:[%s225 + $0x18] sm:$0xff]
      %v638 = vld [vmem:[%s225 + $0x20] sm:$0xff]
      %v639 = vld [vmem:[%s225 + $0x28] sm:$0xff]
      %v640 = vld [vmem:[%s225 + $0x30] sm:$0xff]
      %v641 = vld [vmem:[%s225 + $0x38] sm:$0xff]
      %v642 = vld [vmem:[%s225 + $0x40] sm:$0xff]
      %v643 = vld [vmem:[%s225 + $0x48] sm:$0xff]
      %v644 = vld [vmem:[%s225 + $0x50] sm:$0xff]
      %v645 = vld [vmem:[%s225 + $0x58] sm:$0xff]
      %v646 = vld [vmem:[%s225 + $0x60] sm:$0xff]
      %v647 = vld [vmem:[%s225 + $0x68] sm:$0xff]
      %v648 = vld [vmem:[%s225 + $0x70] sm:$0xff]
      %v649 = vld [vmem:[%s225 + $0x78] sm:$0xff]
      %v650 = vadd.f32 %v634, %v595
      %v651 = vadd.f32 %v635, %v597
      %v652 = vadd.f32 %v636, %v600
      %v653 = vadd.f32 %v637, %v602
      %v654 = vadd.f32 %v638, %v605
      %v655 = vadd.f32 %v639, %v607
      %v656 = vadd.f32 %v640, %v610
      %v657 = vadd.f32 %v641, %v612
      %v658 = vadd.f32 %v642, %v615
      %v659 = vadd.f32 %v643, %v617
      %v660 = vadd.f32 %v644, %v620
      %v661 = vadd.f32 %v645, %v622
      %v662 = vadd.f32 %v646, %v625
      %v663 = vadd.f32 %v647, %v627
      %v664 = vadd.f32 %v648, %v630
      %v665 = vadd.f32 %v649, %v632
      %666 = vst.msk [vmem:[%s225] sm:$0xff] %vm258, %v650
      %667 = vst.msk [vmem:[%s225 + $0x8] sm:$0xff] %vm258, %v651
      %668 = vst.msk [vmem:[%s225 + $0x10] sm:$0xff] %vm258, %v652
      %669 = vst.msk [vmem:[%s225 + $0x18] sm:$0xff] %vm258, %v653
      %670 = vst.msk [vmem:[%s225 + $0x20] sm:$0xff] %vm258, %v654
      %671 = vst.msk [vmem:[%s225 + $0x28] sm:$0xff] %vm258, %v655
      %672 = vst.msk [vmem:[%s225 + $0x30] sm:$0xff] %vm258, %v656
      %673 = vst.msk [vmem:[%s225 + $0x38] sm:$0xff] %vm258, %v657
      %674 = vst.msk [vmem:[%s225 + $0x40] sm:$0xff] %vm258, %v658
      %675 = vst.msk [vmem:[%s225 + $0x48] sm:$0xff] %vm258, %v659
      %676 = vst.msk [vmem:[%s225 + $0x50] sm:$0xff] %vm258, %v660
      %677 = vst.msk [vmem:[%s225 + $0x58] sm:$0xff] %vm258, %v661
      %678 = vst.msk [vmem:[%s225 + $0x60] sm:$0xff] %vm258, %v662
      %679 = vst.msk [vmem:[%s225 + $0x68] sm:$0xff] %vm258, %v663
      %680 = vst.msk [vmem:[%s225 + $0x70] sm:$0xff] %vm258, %v664
      %681 = vst.msk [vmem:[%s225 + $0x78] sm:$0xff] %vm258, %v665
      %v682 = vld [vmem:[#allocation2] sm:$0x1]
      %v683 = vadd.f32 %v540, %v541
      %v684 = vrot.slane %v683, 4
      %v685 = vadd.f32 %v683, %v684
      %v686 = vrot.slane %v685, 2
      %v687 = vadd.f32 %v685, %v686
      %v688 = vrot.slane %v687, 1
      %v689 = vadd.f32 %v687, %v688
      %v690 = vadd.f32 %v682, %v689
      %691 = vst [vmem:[#allocation2] sm:$0x1] %v690
      // Predicated region
      $region41: #{tpu_custom_call.1} parent=35 // pred_check
        %p692 = pneg %p227
      $region42: #{tpu_custom_call.1} parent=35 // pred_check_branch
        %694 = sbr.rel (%p692) target = $region44
      $region43: #{tpu_custom_call.1} parent=35 // pred_region
        %v695 = vld [vmem:[%s2] sm:$0xff]
        %v696 = vld [vmem:[%s2 + $0x8] sm:$0xff]
        %v697 = vld [vmem:[%s2 + $0x10] sm:$0xff]
        %v698 = vld [vmem:[%s2 + $0x18] sm:$0xff]
        %v699 = vld [vmem:[%s2 + $0x20] sm:$0xff]
        %v700 = vld [vmem:[%s2 + $0x28] sm:$0xff]
        %v701 = vld [vmem:[%s2 + $0x30] sm:$0xff]
        %v702 = vld [vmem:[%s2 + $0x38] sm:$0xff]
        %v703 = vld [vmem:[%s2 + $0x40] sm:$0xff]
        %v704 = vld [vmem:[%s2 + $0x48] sm:$0xff]
        %v705 = vld [vmem:[%s2 + $0x50] sm:$0xff]
        %v706 = vld [vmem:[%s2 + $0x58] sm:$0xff]
        %v707 = vld [vmem:[%s2 + $0x60] sm:$0xff]
        %v708 = vld [vmem:[%s2 + $0x68] sm:$0xff]
        %v709 = vld [vmem:[%s2 + $0x70] sm:$0xff]
        %v710 = vld [vmem:[%s2 + $0x78] sm:$0xff]
        %v711 = vld [vmem:[#allocation2] sm:$0x1]
        %712 = vxpose.xlu0.b32.start [1/16] %v711, 128
        %713 = vxpose.xlu0.b32.cont [2/16] 0.0, 128
        %714 = vxpose.xlu0.b32.cont [3/16] 0.0, 128
        %715 = vxpose.xlu0.b32.cont [4/16] 0.0, 128
        %716 = vxpose.xlu0.b32.cont [5/16] 0.0, 128
        %717 = vxpose.xlu0.b32.cont [6/16] 0.0, 128
        %718 = vxpose.xlu0.b32.cont [7/16] 0.0, 128
        %719 = vxpose.xlu0.b32.cont [8/16] 0.0, 128
        %720 = vxpose.xlu0.b32.cont [9/16] 0.0, 128
        %721 = vxpose.xlu0.b32.cont [10/16] 0.0, 128
        %722 = vxpose.xlu0.b32.cont [11/16] 0.0, 128
        %723 = vxpose.xlu0.b32.cont [12/16] 0.0, 128
        %724 = vxpose.xlu0.b32.cont [13/16] 0.0, 128
        %725 = vxpose.xlu0.b32.cont [14/16] 0.0, 128
        %726 = vxpose.xlu0.b32.cont [15/16] 0.0, 128
        %727 = vxpose.xlu0.b32.end [16/16] 0.0, 128
        %v728 = vpop.trf.xlu0
        %v729 = vpop.trf.xlu0
        %v730 = vpop.trf.xlu0
        %v731 = vpop.trf.xlu0
        %v732 = vpop.trf.xlu0
        %v733 = vpop.trf.xlu0
        %v734 = vpop.trf.xlu0
        %v735 = vpop.trf.xlu0
        %v736 = vpop.trf.xlu0
        %v737 = vpop.trf.xlu0
        %v738 = vpop.trf.xlu0
        %v739 = vpop.trf.xlu0
        %v740 = vpop.trf.xlu0
        %v741 = vpop.trf.xlu0
        %v742 = vpop.trf.xlu0
        %v743 = vpop.trf.xlu0
        %v744 = vld [vmem:[%s225] sm:$0xff]
        %v745 = vld [vmem:[%s225 + $0x8] sm:$0xff]
        %v746 = vld [vmem:[%s225 + $0x10] sm:$0xff]
        %v747 = vld [vmem:[%s225 + $0x18] sm:$0xff]
        %v748 = vld [vmem:[%s225 + $0x20] sm:$0xff]
        %v749 = vld [vmem:[%s225 + $0x28] sm:$0xff]
        %v750 = vld [vmem:[%s225 + $0x30] sm:$0xff]
        %v751 = vld [vmem:[%s225 + $0x38] sm:$0xff]
        %v752 = vld [vmem:[%s225 + $0x40] sm:$0xff]
        %v753 = vld [vmem:[%s225 + $0x48] sm:$0xff]
        %v754 = vld [vmem:[%s225 + $0x50] sm:$0xff]
        %v755 = vld [vmem:[%s225 + $0x58] sm:$0xff]
        %v756 = vld [vmem:[%s225 + $0x60] sm:$0xff]
        %v757 = vld [vmem:[%s225 + $0x68] sm:$0xff]
        %v758 = vld [vmem:[%s225 + $0x70] sm:$0xff]
        %v759 = vld [vmem:[%s225 + $0x78] sm:$0xff]
        %761 = vset.pattern.permute.xlu0 0
        %762 = vperm.xlu0 %761, %v728
        %v763 = vpop.permute.xlu0 %762
        %766 = vset.pattern.permute.xlu0 0
        %767 = vperm.xlu0 %766, %v729
        %v768 = vpop.permute.xlu0 %767
        %771 = vset.pattern.permute.xlu0 0
        %772 = vperm.xlu0 %771, %v730
        %v773 = vpop.permute.xlu0 %772
        %776 = vset.pattern.permute.xlu0 0
        %777 = vperm.xlu0 %776, %v731
        %v778 = vpop.permute.xlu0 %777
        %781 = vset.pattern.permute.xlu0 0
        %782 = vperm.xlu0 %781, %v732
        %v783 = vpop.permute.xlu0 %782
        %786 = vset.pattern.permute.xlu0 0
        %787 = vperm.xlu0 %786, %v733
        %v788 = vpop.permute.xlu0 %787
        %791 = vset.pattern.permute.xlu0 0
        %792 = vperm.xlu0 %791, %v734
        %v793 = vpop.permute.xlu0 %792
        %796 = vset.pattern.permute.xlu0 0
        %797 = vperm.xlu0 %796, %v735
        %v798 = vpop.permute.xlu0 %797
        %801 = vset.pattern.permute.xlu0 0
        %802 = vperm.xlu0 %801, %v736
        %v803 = vpop.permute.xlu0 %802
        %806 = vset.pattern.permute.xlu0 0
        %807 = vperm.xlu0 %806, %v737
        %v808 = vpop.permute.xlu0 %807
        %811 = vset.pattern.permute.xlu0 0
        %812 = vperm.xlu0 %811, %v738
        %v813 = vpop.permute.xlu0 %812
        %816 = vset.pattern.permute.xlu0 0
        %817 = vperm.xlu0 %816, %v739
        %v818 = vpop.permute.xlu0 %817
        %821 = vset.pattern.permute.xlu0 0
        %822 = vperm.xlu0 %821, %v740
        %v823 = vpop.permute.xlu0 %822
        %826 = vset.pattern.permute.xlu0 0
        %827 = vperm.xlu0 %826, %v741
        %v828 = vpop.permute.xlu0 %827
        %831 = vset.pattern.permute.xlu0 0
        %832 = vperm.xlu0 %831, %v742
        %v833 = vpop.permute.xlu0 %832
        %836 = vset.pattern.permute.xlu0 0
        %837 = vperm.xlu0 %836, %v743
        %v838 = vpop.permute.xlu0 %837
        %v840 = vmul.f32 %v763, %v695
        %v841 = vmul.f32 %v768, %v696
        %v842 = vmul.f32 %v773, %v697
        %v843 = vmul.f32 %v778, %v698
        %v844 = vmul.f32 %v783, %v699
        %v845 = vmul.f32 %v788, %v700
        %v846 = vmul.f32 %v793, %v701
        %v847 = vmul.f32 %v798, %v702
        %v848 = vmul.f32 %v803, %v703
        %v849 = vmul.f32 %v808, %v704
        %v850 = vmul.f32 %v813, %v705
        %v851 = vmul.f32 %v818, %v706
        %v852 = vmul.f32 %v823, %v707
        %v853 = vmul.f32 %v828, %v708
        %v854 = vmul.f32 %v833, %v709
        %v855 = vmul.f32 %v838, %v710
        %v856 = vsub.f32 %v744, %v840
        %v857 = vsub.f32 %v745, %v841
        %v858 = vsub.f32 %v746, %v842
        %v859 = vsub.f32 %v747, %v843
        %v860 = vsub.f32 %v748, %v844
        %v861 = vsub.f32 %v749, %v845
        %v862 = vsub.f32 %v750, %v846
        %v863 = vsub.f32 %v751, %v847
        %v864 = vsub.f32 %v752, %v848
        %v865 = vsub.f32 %v753, %v849
        %v866 = vsub.f32 %v754, %v850
        %v867 = vsub.f32 %v755, %v851
        %v868 = vsub.f32 %v756, %v852
        %v869 = vsub.f32 %v757, %v853
        %v870 = vsub.f32 %v758, %v854
        %v871 = vsub.f32 %v759, %v855
        %v872 = vmul.f32 %v856, %v856
        %v873 = vmul.f32 %v857, %v857
        %v874 = vmul.f32 %v858, %v858
        %v875 = vmul.f32 %v859, %v859
        %v876 = vmul.f32 %v860, %v860
        %v877 = vmul.f32 %v861, %v861
        %v878 = vmul.f32 %v862, %v862
        %v879 = vmul.f32 %v863, %v863
        %v880 = vmul.f32 %v864, %v864
        %v881 = vmul.f32 %v865, %v865
        %v882 = vmul.f32 %v866, %v866
        %v883 = vmul.f32 %v867, %v867
        %v884 = vmul.f32 %v868, %v868
        %v885 = vmul.f32 %v869, %v869
        %v886 = vmul.f32 %v870, %v870
        %v887 = vmul.f32 %v871, %v871
        %v888 = vsel %vm258, %v872, 0.0
        %v889 = vsel %vm258, %v873, 0.0
        %v890 = vadd.f32 %v888, %v889
        %v891 = vsel %vm258, %v874, 0.0
        %v892 = vadd.f32 %v890, %v891
        %v893 = vsel %vm258, %v875, 0.0
        %v894 = vadd.f32 %v892, %v893
        %v895 = vsel %vm258, %v876, 0.0
        %v896 = vadd.f32 %v894, %v895
        %v897 = vsel %vm258, %v877, 0.0
        %v898 = vadd.f32 %v896, %v897
        %v899 = vsel %vm258, %v878, 0.0
        %v900 = vadd.f32 %v898, %v899
        %v901 = vsel %vm258, %v879, 0.0
        %v902 = vadd.f32 %v900, %v901
        %v903 = vsel %vm258, %v880, 0.0
        %v904 = vadd.f32 %v902, %v903
        %v905 = vsel %vm258, %v881, 0.0
        %v906 = vadd.f32 %v904, %v905
        %v907 = vsel %vm258, %v882, 0.0
        %v908 = vadd.f32 %v906, %v907
        %v909 = vsel %vm258, %v883, 0.0
        %v910 = vadd.f32 %v908, %v909
        %v911 = vsel %vm258, %v884, 0.0
        %v912 = vadd.f32 %v910, %v911
        %v913 = vsel %vm258, %v885, 0.0
        %v914 = vadd.f32 %v912, %v913
        %v915 = vsel %vm258, %v886, 0.0
        %v916 = vadd.f32 %v914, %v915
        %v917 = vsel %vm258, %v887, 0.0
        %v918 = vadd.f32 %v916, %v917
        %919 = vadd.xlane.f32.xlu0 %v918
        %v920 = vpop.xlane.xlu0 %919
        %v921 = vrot.slane %v920, 4
        %v922 = vadd.f32 %v920, %v921
        %v923 = vrot.slane %v922, 2
        %v924 = vadd.f32 %v922, %v923
        %v925 = vrot.slane %v924, 1
        %v926 = vadd.f32 %v924, %v925
        %s927 = vtos %v926
        %s928 = smax.f32 %s927, 1e-24
        %v929 = vstv %s928
        %v930 = vrsqrt.pop %v929
        %v931 = vmul.f32 %v930, %v929
        %v932 = vmul.f32 %v931, %v930
        %v933 = vmul.f32 0.5, %v932
        %v934 = vsub.f32 1.5, %v933
        %v935 = vmul.f32 %v930, %v934
        %vm936 = vweird.f32 %v929
        %vm937 = vweird.f32 %v930
        %vm938 = vmor %vm936, %vm937
        %v939 = vsel %vm938, %v930, %v935
        %s940 = vtos %v939
        %v941 = vstv %s940
        %v942 = vmul.f32 %v856, %v941
        %v943 = vmul.f32 %v857, %v941
        %v944 = vmul.f32 %v858, %v941
        %v945 = vmul.f32 %v859, %v941
        %v946 = vmul.f32 %v860, %v941
        %v947 = vmul.f32 %v861, %v941
        %v948 = vmul.f32 %v862, %v941
        %v949 = vmul.f32 %v863, %v941
        %v950 = vmul.f32 %v864, %v941
        %v951 = vmul.f32 %v865, %v941
        %v952 = vmul.f32 %v866, %v941
        %v953 = vmul.f32 %v867, %v941
        %v954 = vmul.f32 %v868, %v941
        %v955 = vmul.f32 %v869, %v941
        %v956 = vmul.f32 %v870, %v941
        %v957 = vmul.f32 %v871, %v941
        %958 = vst.msk [vmem:[%s225] sm:$0xff] %vm258, %v942
        %959 = vst.msk [vmem:[%s225 + $0x8] sm:$0xff] %vm258, %v943
        %960 = vst.msk [vmem:[%s225 + $0x10] sm:$0xff] %vm258, %v944
        %961 = vst.msk [vmem:[%s225 + $0x18] sm:$0xff] %vm258, %v945
        %962 = vst.msk [vmem:[%s225 + $0x20] sm:$0xff] %vm258, %v946
        %963 = vst.msk [vmem:[%s225 + $0x28] sm:$0xff] %vm258, %v947
        %964 = vst.msk [vmem:[%s225 + $0x30] sm:$0xff] %vm258, %v948
        %965 = vst.msk [vmem:[%s225 + $0x38] sm:$0xff] %vm258, %v949
        %966 = vst.msk [vmem:[%s225 + $0x40] sm:$0xff] %vm258, %v950
        %967 = vst.msk [vmem:[%s225 + $0x48] sm:$0xff] %vm258, %v951
        %968 = vst.msk [vmem:[%s225 + $0x50] sm:$0xff] %vm258, %v952
        %969 = vst.msk [vmem:[%s225 + $0x58] sm:$0xff] %vm258, %v953
        %970 = vst.msk [vmem:[%s225 + $0x60] sm:$0xff] %vm258, %v954
        %971 = vst.msk [vmem:[%s225 + $0x68] sm:$0xff] %vm258, %v955
        %972 = vst.msk [vmem:[%s225 + $0x70] sm:$0xff] %vm258, %v956
        %973 = vst.msk [vmem:[%s225 + $0x78] sm:$0xff] %vm258, %v957
      $region44: #{tpu_custom_call.1} parent=35 // pred_fallthru
        _
      %p974 = scmp.lt.s32.totalorder %s19, 1
      %s975 = scalar_select %p974, %s19, 1
      %s976 = smul.addr %s975, 16
      %s977 = smul.addr %s976, 8
      %s978 = scalar_lea.vmem %s4, %s977
      // Predicated region
      $region45: #{tpu_custom_call.1} parent=35 // pred_check
        %p979 = pneg %p136
      $region46: #{tpu_custom_call.1} parent=35 // pred_check_branch
        %981 = sbr.rel (%p979) target = $region48
      $region47: #{tpu_custom_call.1} parent=35 // pred_region
        _
      $region48: #{tpu_custom_call.1} parent=35 // pred_fallthru
        _
    $region36: #{tpu_custom_call.1} parent=5 // pred_fallthru
      _
    %p982 = scmp.le.s32.totalorder 2, %s10
    // Predicated region
    $region49: #{tpu_custom_call.1} parent=5 // pred_check
      %p983 = pneg %p982
    $region50: #{tpu_custom_call.1} parent=5 // pred_check_branch
      %985 = sbr.rel (%p983) target = $region52
    $region51: #{tpu_custom_call.1} parent=5 // pred_region
      %s986 = ssub.s32 %s10, 2
      // Predicated region
      $region53: #{tpu_custom_call.1} parent=51 // pred_check
        %p987 = pneg %p142
      $region54: #{tpu_custom_call.1} parent=51 // pred_check_branch
        %989 = sbr.rel (%p987) target = $region56
      $region55: #{tpu_custom_call.1} parent=51 // pred_region
        %p990 = scmp.lt.s32.totalorder %s21, 1
        %s991 = scalar_select %p990, %s21, 1
        %s992 = smul.addr %s991, 16
        %s993 = smul.addr %s992, 8
        %s994 = scalar_lea.vmem %s4, %s993
      $region56: #{tpu_custom_call.1} parent=51 // pred_fallthru
        _
    $region52: #{tpu_custom_call.1} parent=5 // pred_fallthru
      _
  $region6: #{tpu_custom_call.1} parent=0 // loop_footer
    %s14 = sadd.s32 1, %s10
  $region7: #{tpu_custom_call.1} parent=0 // loop_footer_branch
    %9 = sbr.rel target = $region3
  $region8: #{tpu_custom_call.1} parent=0 // loop_exit
    _

</llo_original>
